<compile_context>
chip_gen: v7x
topology: tpu7x:2x2x1
jax: 0.10.0
libtpu: 0.0.40
codegen_flags: <defaults>
</compile_context>

<pallas_src>
from functools import partial

import jax
import jax.numpy as jnp
from jax.experimental import pallas as pl
from jax.experimental.pallas import tpu as pltpu


def mlp_kernel(x_ref, w1_ref, b1_ref, w2_ref, b2_ref, w3_ref, b3_ref, o_ref):
    # x_ref: [tb, n_in] f32 (cast to bf16 in-kernel); wN_ref: bf16 [in, out];
    # bN_ref: f32 [1, out]; o_ref: [tb, n_out] f32 (masked store on the ragged tile).
    x = x_ref[...].astype(jnp.bfloat16)
    h1 = jnp.dot(x, w1_ref[...], preferred_element_type=jnp.float32) + b1_ref[...]
    h1 = jnp.maximum(h1, 0.0)                                   # ReLU in f32 (VPU)
    h2 = jnp.dot(h1.astype(jnp.bfloat16), w2_ref[...],
                 preferred_element_type=jnp.float32) + b2_ref[...]
    h2 = jnp.maximum(h2, 0.0)                                   # ReLU in f32 (VPU)
    out = jnp.dot(h2.astype(jnp.bfloat16), w3_ref[...],
                  preferred_element_type=jnp.float32) + b3_ref[...]
    o_ref[...] = out.astype(o_ref.dtype)


def _round_up(n, m):
    return ((n + m - 1) // m) * m


def prepare_params(params):
    """One-time parameter conversion (do NOT do this per forward call).

    PyTorch layout weight [out, in] -> [in, out] bf16 (MXU operands); biases ->
    f32 [1, out].  No lane padding: the kernel writes the true n_out lanes.
    """
    w1, b1 = params["fc1"]
    w2, b2 = params["fc2"]
    w3, b3 = params["fc3"]

    w1t = w1.T.astype(jnp.bfloat16)
    w2t = w2.T.astype(jnp.bfloat16)
    w3t = w3.T.astype(jnp.bfloat16)

    b1r = b1[None, :].astype(jnp.float32)
    b2r = b2[None, :].astype(jnp.float32)
    b3r = b3[None, :].astype(jnp.float32)

    return (w1t, b1r, w2t, b2r, w3t, b3r)


def _pick_batch_tile(B, block_b):
    """Largest useful batch tile, multiple of 16 (bf16 sublane pack)."""
    if B > block_b:
        return block_b                              # grid >= 2 automatically
    if B >= 1024:
        # Big single-tile batch: split into 2 steps so both v7x TensorCores work.
        return _round_up(pl.cdiv(B, 2), 16)
    # Small batch: one (ragged) tile; extra grid steps would only add overhead.
    return _round_up(max(B, 1), 16)


@partial(jax.jit, static_argnames=("block_b",))
def model_dqn1_forward(x, w1t, b1r, w2t, b2r, w3t, b3r, *, block_b=1024):
    """x: [B, n_in] float32.  Weights/biases as produced by prepare_params."""
    B, n_in = x.shape
    n_mid = w1t.shape[1]
    n_out = w3t.shape[1]

    tb = _pick_batch_tile(B, block_b)
    grid = (pl.cdiv(B, tb),)                        # ragged last tile masked by Pallas

    # Weights/biases: constant block index -> stay VMEM-resident across the grid.
    const = lambda a: pl.BlockSpec(a.shape, lambda i: (0,) * a.ndim)

    flops = 2 * B * (n_in * n_mid + n_mid * n_mid + n_mid * n_out)
    bytes_accessed = (
        B * n_in * 4 + B * n_out * 4
        + 2 * (w1t.size + w2t.size + w3t.size)      # bf16 weights
        + 4 * (b1r.size + b2r.size + b3r.size)      # f32 biases
    )

    return pl.pallas_call(
        mlp_kernel,
        out_shape=jax.ShapeDtypeStruct((B, n_out), jnp.float32),
        grid=grid,
        in_specs=[
            pl.BlockSpec((tb, n_in), lambda i: (i, 0)),   # x tiled on batch
            const(w1t), const(b1r),
            const(w2t), const(b2r),
            const(w3t), const(b3r),
        ],
        out_specs=pl.BlockSpec((tb, n_out), lambda i: (i, 0)),
        compiler_params=pltpu.CompilerParams(
            dimension_semantics=("parallel",),            # shards batch across TCs (v7x)
        ),
        cost_estimate=pl.CostEstimate(
            flops=flops, transcendentals=0, bytes_accessed=bytes_accessed),
    )(x, w1t, b1r, w2t, b2r, w3t, b3r)


def init_linear(key, n_in, n_out):
    # Deterministic init mimicking PyTorch nn.Linear default (uniform +-1/sqrt(fan_in)).
    kw, kb = jax.random.split(key)
    bound = 1.0 / jnp.sqrt(jnp.float32(n_in))
    w = jax.random.uniform(kw, (n_out, n_in), jnp.float32, -bound, bound)
    b = jax.random.uniform(kb, (n_out,), jnp.float32, -bound, bound)
    return w, b


def reference_forward(x, params):
    w1, b1 = params["fc1"]
    w2, b2 = params["fc2"]
    w3, b3 = params["fc3"]
    h1 = jax.nn.relu(x @ w1.T + b1)
    h2 = jax.nn.relu(h1 @ w2.T + b2)
    return h2 @ w3.T + b3


if __name__ == "__main__":
    # Small shapes consistent with a reversi DQN: 8x8 board flattened -> 64 inputs.
    B, n_in, n_mid, n_out = 8, 64, 128, 64

    root = jax.random.PRNGKey(0)
    kx, k1, k2, k3, kx2 = jax.random.split(root, 5)

    params = {
        "fc1": init_linear(k1, n_in, n_mid),
        "fc2": init_linear(k2, n_mid, n_mid),
        "fc3": init_linear(k3, n_mid, n_out),
    }
    x = jax.random.normal(kx, (B, n_in), jnp.float32)

    # One-time parameter prep (transpose / bf16 cast) outside the call path.
    kernel_params = prepare_params(params)

    out = model_dqn1_forward(x, *kernel_params)
    out = jax.block_until_ready(out)

    ref = reference_forward(x, params)  # pure-f32 reference (module semantics)
    assert out.shape == (B, n_out)
    # Matmul operands are bf16 (f32 accumulation) -> loose tolerance vs f32 reference.
    assert jnp.allclose(out, ref, atol=5e-2, rtol=5e-2), "mismatch vs JAX reference"

    # Extra check: ragged batch (not a multiple of the 16-row tile granularity)
    # exercises the cdiv grid + masked last tile path.
    x_odd = jax.random.normal(kx2, (37, n_in), jnp.float32)
    out_odd = jax.block_until_ready(model_dqn1_forward(x_odd, *kernel_params))
    ref_odd = reference_forward(x_odd, params)
    assert out_odd.shape == (37, n_out)
    assert jnp.allclose(out_odd, ref_odd, atol=5e-2, rtol=5e-2), "ragged-batch mismatch"

    print("KERNEL_OK")
</pallas_src>

<mosaic_0001>
module attributes {stable_mosaic.version = 11 : i64} {
  func.func @mlp_kernel(%arg0: i32, %arg1: memref<16x64xf32, #tpu.memory_space<vmem>>, %arg2: memref<64x128xbf16, #tpu.memory_space<vmem>>, %arg3: memref<1x128xf32, #tpu.memory_space<vmem>>, %arg4: memref<128x128xbf16, #tpu.memory_space<vmem>>, %arg5: memref<1x128xf32, #tpu.memory_space<vmem>>, %arg6: memref<128x64xbf16, #tpu.memory_space<vmem>>, %arg7: memref<1x64xf32, #tpu.memory_space<vmem>>, %arg8: memref<16x64xf32, #tpu.memory_space<vmem>>) attributes {dimension_semantics = [#tpu.dimension_semantics<parallel>], iteration_bounds = array<i64: 1>, scalar_prefetch = 0 : i64, scratch_operands = 0 : i64, tpu.core_type = #tpu.core_type<tc>, window_params = [{transform_indices = @transform_0, window_bounds = array<i64: 16, 64>}, {pipeline_mode = #tpu.pipeline_mode<synchronous>, transform_indices = @transform_1, window_bounds = array<i64: 64, 128>}, {pipeline_mode = #tpu.pipeline_mode<synchronous>, transform_indices = @transform_2, window_bounds = array<i64: 1, 128>}, {pipeline_mode = #tpu.pipeline_mode<synchronous>, transform_indices = @transform_3, window_bounds = array<i64: 128, 128>}, {pipeline_mode = #tpu.pipeline_mode<synchronous>, transform_indices = @transform_4, window_bounds = array<i64: 1, 128>}, {pipeline_mode = #tpu.pipeline_mode<synchronous>, transform_indices = @transform_5, window_bounds = array<i64: 128, 64>}, {pipeline_mode = #tpu.pipeline_mode<synchronous>, transform_indices = @transform_6, window_bounds = array<i64: 1, 64>}, {transform_indices = @transform_7, window_bounds = array<i64: 16, 64>}]} {
    %c0 = arith.constant 0 : index
    %c0_0 = arith.constant 0 : index
    %0 = vector.load %arg1[%c0, %c0_0] : memref<16x64xf32, #tpu.memory_space<vmem>>, vector<16x64xf32>
    %1 = arith.truncf %0 : vector<16x64xf32> to vector<16x64xbf16>
    %c0_1 = arith.constant 0 : index
    %c0_2 = arith.constant 0 : index
    %2 = vector.load %arg2[%c0_1, %c0_2] : memref<64x128xbf16, #tpu.memory_space<vmem>>, vector<64x128xbf16>
    %cst = arith.constant dense<0.000000e+00> : vector<16x128xf32>
    %3 = tpu.matmul %1, %2, %cst {dimension_numbers = #tpu.dot_dimension_numbers<[1], [0], [0], [1], [0, 0, 1, 1], [], []>} : vector<16x64xbf16>, vector<64x128xbf16>, vector<16x128xf32> -> vector<16x128xf32>
    %c0_3 = arith.constant 0 : index
    %c0_4 = arith.constant 0 : index
    %4 = vector.load %arg3[%c0_3, %c0_4] : memref<1x128xf32, #tpu.memory_space<vmem>>, vector<1x128xf32>
    %5 = vector.broadcast %4 : vector<1x128xf32> to vector<16x128xf32>
    %6 = arith.addf %3, %5 : vector<16x128xf32>
    %cst_5 = arith.constant 0.000000e+00 : f32
    %7 = vector.broadcast %cst_5 : f32 to vector<16x128xf32>
    %8 = arith.maximumf %6, %7 : vector<16x128xf32>
    %9 = arith.truncf %8 : vector<16x128xf32> to vector<16x128xbf16>
    %c0_6 = arith.constant 0 : index
    %c0_7 = arith.constant 0 : index
    %10 = vector.load %arg4[%c0_6, %c0_7] : memref<128x128xbf16, #tpu.memory_space<vmem>>, vector<128x128xbf16>
    %cst_8 = arith.constant dense<0.000000e+00> : vector<16x128xf32>
    %11 = tpu.matmul %9, %10, %cst_8 {dimension_numbers = #tpu.dot_dimension_numbers<[1], [0], [0], [1], [0, 0, 1, 1], [], []>} : vector<16x128xbf16>, vector<128x128xbf16>, vector<16x128xf32> -> vector<16x128xf32>
    %c0_9 = arith.constant 0 : index
    %c0_10 = arith.constant 0 : index
    %12 = vector.load %arg5[%c0_9, %c0_10] : memref<1x128xf32, #tpu.memory_space<vmem>>, vector<1x128xf32>
    %13 = vector.broadcast %12 : vector<1x128xf32> to vector<16x128xf32>
    %14 = arith.addf %11, %13 : vector<16x128xf32>
    %cst_11 = arith.constant 0.000000e+00 : f32
    %15 = vector.broadcast %cst_11 : f32 to vector<16x128xf32>
    %16 = arith.maximumf %14, %15 : vector<16x128xf32>
    %17 = arith.truncf %16 : vector<16x128xf32> to vector<16x128xbf16>
    %c0_12 = arith.constant 0 : index
    %c0_13 = arith.constant 0 : index
    %18 = vector.load %arg6[%c0_12, %c0_13] : memref<128x64xbf16, #tpu.memory_space<vmem>>, vector<128x64xbf16>
    %cst_14 = arith.constant dense<0.000000e+00> : vector<16x64xf32>
    %19 = tpu.matmul %17, %18, %cst_14 {dimension_numbers = #tpu.dot_dimension_numbers<[1], [0], [0], [1], [0, 0, 1, 1], [], []>} : vector<16x128xbf16>, vector<128x64xbf16>, vector<16x64xf32> -> vector<16x64xf32>
    %c0_15 = arith.constant 0 : index
    %c0_16 = arith.constant 0 : index
    %20 = vector.load %arg7[%c0_15, %c0_16] : memref<1x64xf32, #tpu.memory_space<vmem>>, vector<1x64xf32>
    %21 = vector.broadcast %20 : vector<1x64xf32> to vector<16x64xf32>
    %22 = arith.addf %19, %21 : vector<16x64xf32>
    %c0_17 = arith.constant 0 : index
    %c0_18 = arith.constant 0 : index
    %23 = vector.load %arg8[%c0_17, %c0_18] : memref<16x64xf32, #tpu.memory_space<vmem>>, vector<16x64xf32>
    tpu.vector_store %arg8[%c0_17, %c0_18], %22 {strides = array<i32>} : memref<16x64xf32, #tpu.memory_space<vmem>>, vector<16x64xf32>,
    return
  }
  func.func @transform_0(%arg0: i32) -> (i32, i32) {
    %c0_i32 = arith.constant 0 : i32
    %c0_i32_0 = arith.constant 0 : i32
    return %arg0, %c0_i32 : i32, i32
  }
  func.func @transform_1(%arg0: i32) -> (i32, i32) {
    %c0_i32 = arith.constant 0 : i32
    %c0_i32_0 = arith.constant 0 : i32
    %c0_i32_1 = arith.constant 0 : i32
    return %c0_i32, %c0_i32_0 : i32, i32
  }
  func.func @transform_2(%arg0: i32) -> (i32, i32) {
    %c0_i32 = arith.constant 0 : i32
    %c0_i32_0 = arith.constant 0 : i32
    %c0_i32_1 = arith.constant 0 : i32
    return %c0_i32, %c0_i32_0 : i32, i32
  }
  func.func @transform_3(%arg0: i32) -> (i32, i32) {
    %c0_i32 = arith.constant 0 : i32
    %c0_i32_0 = arith.constant 0 : i32
    %c0_i32_1 = arith.constant 0 : i32
    return %c0_i32, %c0_i32_0 : i32, i32
  }
  func.func @transform_4(%arg0: i32) -> (i32, i32) {
    %c0_i32 = arith.constant 0 : i32
    %c0_i32_0 = arith.constant 0 : i32
    %c0_i32_1 = arith.constant 0 : i32
    return %c0_i32, %c0_i32_0 : i32, i32
  }
  func.func @transform_5(%arg0: i32) -> (i32, i32) {
    %c0_i32 = arith.constant 0 : i32
    %c0_i32_0 = arith.constant 0 : i32
    %c0_i32_1 = arith.constant 0 : i32
    return %c0_i32, %c0_i32_0 : i32, i32
  }
  func.func @transform_6(%arg0: i32) -> (i32, i32) {
    %c0_i32 = arith.constant 0 : i32
    %c0_i32_0 = arith.constant 0 : i32
    %c0_i32_1 = arith.constant 0 : i32
    return %c0_i32, %c0_i32_0 : i32, i32
  }
  func.func @transform_7(%arg0: i32) -> (i32, i32) {
    %c0_i32 = arith.constant 0 : i32
    %c0_i32_0 = arith.constant 0 : i32
    return %arg0, %c0_i32 : i32, i32
  }
}

</mosaic_0001>

<llo_original>
// kernel: model_dqn1_forward.1
$region0: #{model_dqn1_forward.1}
  #allocation0 [shape = 'u32[]', space=smem, size = 0x4, offset = 0x4, fixed_abs, tag = 'smem constant byte address 0x4 - core index']
  #allocation1 [shape = 'u32[144,128]{1,0:T(1,128)}', space=vmem, size = 0x12000, scoped, tag = 'internal scratch']
  %s0 = inlined_call_operand.vmem [shape: f32[8,64], index: 0, kind: input, shape index: {}]
  %s1 = inlined_call_operand.vmem [shape: bf16[64,128], index: 1, kind: input, shape index: {}]
  %s2 = inlined_call_operand.vmem [shape: f32[1,128], index: 2, kind: input, shape index: {}]
  %s3 = inlined_call_operand.vmem [shape: bf16[128,128], index: 3, kind: input, shape index: {}]
  %s4 = inlined_call_operand.vmem [shape: f32[1,128], index: 4, kind: input, shape index: {}]
  %s5 = inlined_call_operand.vmem [shape: bf16[128,64], index: 5, kind: input, shape index: {}]
  %s6 = inlined_call_operand.vmem [shape: f32[1,64], index: 6, kind: input, shape index: {}]
  %s7 = inlined_call_operand.hbm [shape: f32[8,64], index: 7, kind: output, shape index: {}]
  %s8 = sld [smem:[#allocation0]]
  $region38: #{model_dqn1_forward.1} parent=0
    _
  %s10 = ssub.s32 1, %s8
  %s11 = scalar_select 0, %s10, %s8
  $region1: #{model_dqn1_forward.1} parent=0
    #allocation2 [shape = 'u8[8192]{0}', space=vmem, size = 0x2000, scoped, tag = 'output window, operand 0, single buffered']
    #allocation3 [shape = 's32[1]{0}', space=sflag, size = 0x4, scoped, tag = 'scoped memory for model_dqn1_forward.1']
    %12 = vsyncpa [#allocation3], 0
    // Predicated region
    $region2: #{model_dqn1_forward.1} parent=1 // pred_check
      _
    $region3: #{model_dqn1_forward.1} parent=1 // pred_check_branch
      %14 = sbr.rel (0) target = $region5
    $region4: #{model_dqn1_forward.1} parent=1 // pred_region
      _
    $region5: #{model_dqn1_forward.1} parent=1 // pred_fallthru
      _
    // Predicated region
    $region6: #{model_dqn1_forward.1} parent=1 // pred_check
      _
    $region7: #{model_dqn1_forward.1} parent=1 // pred_check_branch
      %16 = sbr.rel (0) target = $region9
    $region8: #{model_dqn1_forward.1} parent=1 // pred_region
      _
    $region9: #{model_dqn1_forward.1} parent=1 // pred_fallthru
      _
    // Predicated region
    $region10: #{model_dqn1_forward.1} parent=1 // pred_check
      _
    $region11: #{model_dqn1_forward.1} parent=1 // pred_check_branch
      %18 = sbr.rel (0) target = $region13
    $region12: #{model_dqn1_forward.1} parent=1 // pred_region
      _
    $region13: #{model_dqn1_forward.1} parent=1 // pred_fallthru
      _
    // Predicated region
    $region14: #{model_dqn1_forward.1} parent=1 // pred_check
      _
    $region15: #{model_dqn1_forward.1} parent=1 // pred_check_branch
      %20 = sbr.rel (0) target = $region17
    $region16: #{model_dqn1_forward.1} parent=1 // pred_region
      _
    $region17: #{model_dqn1_forward.1} parent=1 // pred_fallthru
      _
    // Predicated region
    $region18: #{model_dqn1_forward.1} parent=1 // pred_check
      _
    $region19: #{model_dqn1_forward.1} parent=1 // pred_check_branch
      %22 = sbr.rel (0) target = $region21
    $region20: #{model_dqn1_forward.1} parent=1 // pred_region
      _
    $region21: #{model_dqn1_forward.1} parent=1 // pred_fallthru
      _
    // Predicated region
    $region22: #{model_dqn1_forward.1} parent=1 // pred_check
      _
    $region23: #{model_dqn1_forward.1} parent=1 // pred_check_branch
      %24 = sbr.rel (0) target = $region25
    $region24: #{model_dqn1_forward.1} parent=1 // pred_region
      _
    $region25: #{model_dqn1_forward.1} parent=1 // pred_fallthru
      _
    // Predicated region
    $region26: #{model_dqn1_forward.1} parent=1 // pred_check
      _
    $region27: #{model_dqn1_forward.1} parent=1 // pred_check_branch
      %26 = sbr.rel (0) target = $region29
    $region28: #{model_dqn1_forward.1} parent=1 // pred_region
      _
    $region29: #{model_dqn1_forward.1} parent=1 // pred_fallthru
      _
    %v28 = vld [vmem:[%s0] sm:$0xff]
    %v29 = vld [vmem:[%s0 + $0x8] sm:$0xff]
    %v30 = vpack.c.bf16 %v29, %v28
    %v31 = vld [vmem:[%s1] sm:$0xf]
    %v32 = vld [vmem:[%s1 + $0x4] sm:$0xf]
    %v33 = vld [vmem:[%s1 + $0x8] sm:$0xf]
    %v34 = vld [vmem:[%s1 + $0xc] sm:$0xf]
    %v35 = vld [vmem:[%s1 + $0x10] sm:$0xf]
    %v36 = vld [vmem:[%s1 + $0x14] sm:$0xf]
    %v37 = vld [vmem:[%s1 + $0x18] sm:$0xf]
    %v38 = vld [vmem:[%s1 + $0x1c] sm:$0xf]
    %v39 = vld [vmem:[%s2] sm:$0x1]
    %v41 = vlaneseq
    %v42 = vshrl.u32 %v41, 7
    %v43 = vsub.s32 0, %v42
    %v44 = vrot.slane %v39, %v43
    %v54 = vunpack.c.l.b16 %v31
    %v55 = vunpack.c.l.b16 %v32
    %v56 = vunpack.c.l.b16 %v33
    %v57 = vunpack.c.l.b16 %v34
    %v58 = vunpack.c.l.b16 %v35
    %v59 = vunpack.c.l.b16 %v36
    %v60 = vunpack.c.l.b16 %v37
    %v61 = vunpack.c.l.b16 %v38
    %v62 = vpack.c.b16 %v55, %v54
    %v63 = vpack.c.b16 %v57, %v56
    %v64 = vpack.c.b16 %v59, %v58
    %v65 = vpack.c.b16 %v61, %v60
    %vm70 = vcmask 523264
    %v72 = vsel %vm70, %v30, 0
    %74 = vmatprep.subr.bf16.mxu0 0
    %75 = vmatpush1.bf16.msra.mxu0 %v62
    %76 = vmatprep.subr.bf16.mxu0 0
    %77 = vmatpush1.bf16.msra.mxu0 %v63
    %78 = vmatprep.subr.bf16.mxu0 0
    %79 = vmatpush1.bf16.msra.mxu0 %v64
    %80 = vmatprep.subr.bf16.mxu0 0
    %81 = vmatpush1.bf16.msra.mxu0 %v65
    %82 = vmatprep.subr.bf16.mxu0 0
    %83 = vmatpush1.bf16.msra.mxu0 0
    %84 = vmatprep.subr.bf16.mxu0 0
    %85 = vmatpush1.bf16.msra.mxu0 0
    %86 = vmatprep.subr.bf16.mxu0 0
    %87 = vmatpush1.bf16.msra.mxu0 0
    %88 = vmatprep.subr.bf16.mxu0 0
    %89 = vmatpush1.bf16.msra.mxu0 0
    %90 = vmatprep.subr.bf16.mxu0 0
    %91 = vmatpush1.bf16.msra.mxu0 0
    %92 = vmatprep.subr.bf16.mxu0 0
    %93 = vmatpush1.bf16.msra.mxu0 0
    %94 = vmatprep.subr.bf16.mxu0 0
    %95 = vmatpush1.bf16.msra.mxu0 0
    %96 = vmatprep.subr.bf16.mxu0 0
    %97 = vmatpush1.bf16.msra.mxu0 0
    %98 = vmatprep.subr.bf16.mxu0 0
    %99 = vmatpush1.bf16.msra.mxu0 0
    %100 = vmatprep.subr.bf16.mxu0 0
    %101 = vmatpush1.bf16.msra.mxu0 0
    %102 = vmatprep.subr.bf16.mxu0 0
    %103 = vmatpush1.bf16.msra.mxu0 0
    %104 = vmatprep.subr.bf16.mxu0 0
    %105 = vmatpush1.bf16.msra.mxu0 0
    %106 = vmatprep.mubr.bf16.mxu0 0
    %107 = vmatmul.mubr.bf16.gmra.mrb[0].mxu0 %v72
    %v108 = vpop.f32.mrb[0].mxu0
    %v109 = vadd.f32 %v44, %v108
    %v110 = vpop.f32.mrb[0].mxu0
    %v111 = vpop.f32.mrb[0].mxu0
    %v112 = vadd.f32 %v44, %v111
    %v113 = vpop.f32.mrb[0].mxu0
    %114 = vdwg.mxu0
    %v115 = vmax.f32 %v109, 0.0
    %v116 = vmax.f32 %v112, 0.0
    %v117 = vpack.c.bf16 %v116, %v115
    %v118 = vld [vmem:[%s3] sm:$0xf]
    %v119 = vld [vmem:[%s3 + $0x4] sm:$0xf]
    %v120 = vld [vmem:[%s3 + $0x8] sm:$0xf]
    %v121 = vld [vmem:[%s3 + $0xc] sm:$0xf]
    %v122 = vld [vmem:[%s3 + $0x10] sm:$0xf]
    %v123 = vld [vmem:[%s3 + $0x14] sm:$0xf]
    %v124 = vld [vmem:[%s3 + $0x18] sm:$0xf]
    %v125 = vld [vmem:[%s3 + $0x1c] sm:$0xf]
    %v126 = vld [vmem:[%s3 + $0x20] sm:$0xf]
    %v127 = vld [vmem:[%s3 + $0x24] sm:$0xf]
    %v128 = vld [vmem:[%s3 + $0x28] sm:$0xf]
    %v129 = vld [vmem:[%s3 + $0x2c] sm:$0xf]
    %v130 = vld [vmem:[%s3 + $0x30] sm:$0xf]
    %v131 = vld [vmem:[%s3 + $0x34] sm:$0xf]
    %v132 = vld [vmem:[%s3 + $0x38] sm:$0xf]
    %v133 = vld [vmem:[%s3 + $0x3c] sm:$0xf]
    %v134 = vld [vmem:[%s4] sm:$0x1]
    %v136 = vlaneseq
    %v137 = vshrl.u32 %v136, 7
    %v138 = vsub.s32 0, %v137
    %v139 = vrot.slane %v134, %v138
    %v157 = vunpack.c.l.b16 %v118
    %v158 = vunpack.c.l.b16 %v119
    %v159 = vunpack.c.l.b16 %v120
    %v160 = vunpack.c.l.b16 %v121
    %v161 = vunpack.c.l.b16 %v122
    %v162 = vunpack.c.l.b16 %v123
    %v163 = vunpack.c.l.b16 %v124
    %v164 = vunpack.c.l.b16 %v125
    %v165 = vunpack.c.l.b16 %v126
    %v166 = vunpack.c.l.b16 %v127
    %v167 = vunpack.c.l.b16 %v128
    %v168 = vunpack.c.l.b16 %v129
    %v169 = vunpack.c.l.b16 %v130
    %v170 = vunpack.c.l.b16 %v131
    %v171 = vunpack.c.l.b16 %v132
    %v172 = vunpack.c.l.b16 %v133
    %v173 = vpack.c.b16 %v158, %v157
    %v174 = vpack.c.b16 %v160, %v159
    %v175 = vpack.c.b16 %v162, %v161
    %v176 = vpack.c.b16 %v164, %v163
    %v177 = vpack.c.b16 %v166, %v165
    %v178 = vpack.c.b16 %v168, %v167
    %v179 = vpack.c.b16 %v170, %v169
    %v180 = vpack.c.b16 %v172, %v171
    %189 = vmatprep.subr.bf16.mxu0 0
    %190 = vmatpush1.bf16.msra.mxu0 %v173
    %191 = vmatprep.subr.bf16.mxu0 0
    %192 = vmatpush1.bf16.msra.mxu0 %v174
    %193 = vmatprep.subr.bf16.mxu0 0
    %194 = vmatpush1.bf16.msra.mxu0 %v175
    %195 = vmatprep.subr.bf16.mxu0 0
    %196 = vmatpush1.bf16.msra.mxu0 %v176
    %197 = vmatprep.subr.bf16.mxu0 0
    %198 = vmatpush1.bf16.msra.mxu0 %v177
    %199 = vmatprep.subr.bf16.mxu0 0
    %200 = vmatpush1.bf16.msra.mxu0 %v178
    %201 = vmatprep.subr.bf16.mxu0 0
    %202 = vmatpush1.bf16.msra.mxu0 %v179
    %203 = vmatprep.subr.bf16.mxu0 0
    %204 = vmatpush1.bf16.msra.mxu0 %v180
    %205 = vmatprep.subr.bf16.mxu0 0
    %206 = vmatpush1.bf16.msra.mxu0 0
    %207 = vmatprep.subr.bf16.mxu0 0
    %208 = vmatpush1.bf16.msra.mxu0 0
    %209 = vmatprep.subr.bf16.mxu0 0
    %210 = vmatpush1.bf16.msra.mxu0 0
    %211 = vmatprep.subr.bf16.mxu0 0
    %212 = vmatpush1.bf16.msra.mxu0 0
    %213 = vmatprep.subr.bf16.mxu0 0
    %214 = vmatpush1.bf16.msra.mxu0 0
    %215 = vmatprep.subr.bf16.mxu0 0
    %216 = vmatpush1.bf16.msra.mxu0 0
    %217 = vmatprep.subr.bf16.mxu0 0
    %218 = vmatpush1.bf16.msra.mxu0 0
    %219 = vmatprep.subr.bf16.mxu0 0
    %220 = vmatpush1.bf16.msra.mxu0 0
    %221 = vmatprep.mubr.bf16.mxu0 0
    %222 = vmatmul.mubr.bf16.gmra.mrb[0].mxu0 %v117
    %v223 = vpop.f32.mrb[0].mxu0
    %v224 = vadd.f32 %v139, %v223
    %v225 = vpop.f32.mrb[0].mxu0
    %v226 = vpop.f32.mrb[0].mxu0
    %v227 = vadd.f32 %v139, %v226
    %v228 = vpop.f32.mrb[0].mxu0
    %229 = vdwg.mxu0
    %v230 = vmax.f32 %v224, 0.0
    %v231 = vmax.f32 %v227, 0.0
    %v232 = vpack.c.bf16 %v231, %v230
    %v233 = vld [vmem:[%s5] sm:$0xf]
    %v234 = vld [vmem:[%s5 + $0x4] sm:$0xf]
    %v235 = vld [vmem:[%s5 + $0x8] sm:$0xf]
    %v236 = vld [vmem:[%s5 + $0xc] sm:$0xf]
    %v237 = vld [vmem:[%s5 + $0x10] sm:$0xf]
    %v238 = vld [vmem:[%s5 + $0x14] sm:$0xf]
    %v239 = vld [vmem:[%s5 + $0x18] sm:$0xf]
    %v240 = vld [vmem:[%s5 + $0x1c] sm:$0xf]
    %v241 = vld [vmem:[%s5 + $0x20] sm:$0xf]
    %v242 = vld [vmem:[%s5 + $0x24] sm:$0xf]
    %v243 = vld [vmem:[%s5 + $0x28] sm:$0xf]
    %v244 = vld [vmem:[%s5 + $0x2c] sm:$0xf]
    %v245 = vld [vmem:[%s5 + $0x30] sm:$0xf]
    %v246 = vld [vmem:[%s5 + $0x34] sm:$0xf]
    %v247 = vld [vmem:[%s5 + $0x38] sm:$0xf]
    %v248 = vld [vmem:[%s5 + $0x3c] sm:$0xf]
    %v249 = vld [vmem:[%s6] sm:$0x1]
    %v251 = vlaneseq
    %v252 = vshrl.u32 %v251, 7
    %v253 = vsub.s32 0, %v252
    %v254 = vrot.slane %v249, %v253
    %v272 = vunpack.c.l.b16 %v233
    %v273 = vunpack.c.l.b16 %v234
    %v274 = vunpack.c.l.b16 %v235
    %v275 = vunpack.c.l.b16 %v236
    %v276 = vunpack.c.l.b16 %v237
    %v277 = vunpack.c.l.b16 %v238
    %v278 = vunpack.c.l.b16 %v239
    %v279 = vunpack.c.l.b16 %v240
    %v280 = vunpack.c.l.b16 %v241
    %v281 = vunpack.c.l.b16 %v242
    %v282 = vunpack.c.l.b16 %v243
    %v283 = vunpack.c.l.b16 %v244
    %v284 = vunpack.c.l.b16 %v245
    %v285 = vunpack.c.l.b16 %v246
    %v286 = vunpack.c.l.b16 %v247
    %v287 = vunpack.c.l.b16 %v248
    %v288 = vpack.c.b16 %v273, %v272
    %v289 = vpack.c.b16 %v275, %v274
    %v290 = vpack.c.b16 %v277, %v276
    %v291 = vpack.c.b16 %v279, %v278
    %v292 = vpack.c.b16 %v281, %v280
    %v293 = vpack.c.b16 %v283, %v282
    %v294 = vpack.c.b16 %v285, %v284
    %v295 = vpack.c.b16 %v287, %v286
    %304 = vmatprep.subr.bf16.mxu0 0
    %305 = vmatpush1.bf16.msra.mxu0 %v288
    %306 = vmatprep.subr.bf16.mxu0 0
    %307 = vmatpush1.bf16.msra.mxu0 %v289
    %308 = vmatprep.subr.bf16.mxu0 0
    %309 = vmatpush1.bf16.msra.mxu0 %v290
    %310 = vmatprep.subr.bf16.mxu0 0
    %311 = vmatpush1.bf16.msra.mxu0 %v291
    %312 = vmatprep.subr.bf16.mxu0 0
    %313 = vmatpush1.bf16.msra.mxu0 %v292
    %314 = vmatprep.subr.bf16.mxu0 0
    %315 = vmatpush1.bf16.msra.mxu0 %v293
    %316 = vmatprep.subr.bf16.mxu0 0
    %317 = vmatpush1.bf16.msra.mxu0 %v294
    %318 = vmatprep.subr.bf16.mxu0 0
    %319 = vmatpush1.bf16.msra.mxu0 %v295
    %320 = vmatprep.subr.bf16.mxu0 0
    %321 = vmatpush1.bf16.msra.mxu0 0
    %322 = vmatprep.subr.bf16.mxu0 0
    %323 = vmatpush1.bf16.msra.mxu0 0
    %324 = vmatprep.subr.bf16.mxu0 0
    %325 = vmatpush1.bf16.msra.mxu0 0
    %326 = vmatprep.subr.bf16.mxu0 0
    %327 = vmatpush1.bf16.msra.mxu0 0
    %328 = vmatprep.subr.bf16.mxu0 0
    %329 = vmatpush1.bf16.msra.mxu0 0
    %330 = vmatprep.subr.bf16.mxu0 0
    %331 = vmatpush1.bf16.msra.mxu0 0
    %332 = vmatprep.subr.bf16.mxu0 0
    %333 = vmatpush1.bf16.msra.mxu0 0
    %334 = vmatprep.subr.bf16.mxu0 0
    %335 = vmatpush1.bf16.msra.mxu0 0
    %336 = vmatprep.mubr.bf16.mxu0 0
    %337 = vmatmul.mubr.bf16.gmra.mrb[0].mxu0 %v232
    %v338 = vpop.f32.mrb[0].mxu0
    %v339 = vadd.f32 %v254, %v338
    %v340 = vpop.f32.mrb[0].mxu0
    %v341 = vpop.f32.mrb[0].mxu0
    %v342 = vadd.f32 %v254, %v341
    %v343 = vpop.f32.mrb[0].mxu0
    %344 = vdwg.mxu0
    %345 = vst.msk [vmem:[#allocation2] sm:$0xff] %vm70, %v339
    %346 = vst.msk [vmem:[#allocation2 + $0x8] sm:$0xff] %vm70, %v342
    // Predicated region
    $region30: #{model_dqn1_forward.1} parent=1 // pred_check
      _
    $region31: #{model_dqn1_forward.1} parent=1 // pred_check_branch
      %348 = sbr.rel (0) target = $region33
    $region32: #{model_dqn1_forward.1} parent=1 // pred_region
      %s350 = ssub.s32 256, 128
      %351 = vsyncadd [#allocation3], %s350
      %s352 = sshll.u32 [#allocation2], 4
      %s353 = int_to_ptr.vmem [resolvable:$true] %s352
      %358 = dma.vmem_to_hbm [thread:$0]  %s353, 128, %s7, [#allocation3], 128, 128, 8
    $region33: #{model_dqn1_forward.1} parent=1 // pred_fallthru
      _
    // Predicated region
    $region34: #{model_dqn1_forward.1} parent=1 // pred_check
      _
    $region35: #{model_dqn1_forward.1} parent=1 // pred_check_branch
      %360 = sbr.rel (0) target = $region37
    $region36: #{model_dqn1_forward.1} parent=1 // pred_region
      %361 = dma.done [#allocation3], 256
    $region37: #{model_dqn1_forward.1} parent=1 // pred_fallthru
      _
    %362 = vsyncpa [#allocation3], 1

</llo_original>
